<compile_context>
chip_gen: v7x
topology: tpu7x:2x2x1
jax: 0.10.0
libtpu: 0.0.40
codegen_flags: <defaults>
</compile_context>

<pallas_src>
import math
from functools import partial

import numpy as np
import jax
import jax.numpy as jnp
from jax.experimental import pallas as pl
from jax.experimental.pallas import tpu as pltpu


def _convT_bn_silu_kernel(x_ref, w_ref, shift_ref, o_ref, *, approx_sigmoid):
    # x_ref:     (tm, C1)          native input dtype (cast in-register below)
    # w_ref:     (k, C1, k*C2)     matmul dtype, BN scale folded in, cols = (kw, c2)
    # shift_ref: (1, k*C2)         f32 fused BatchNorm shift
    # o_ref:     (rh, k, W, k*C2)  output dtype; tm == rh * W
    rh, kk, W, kc2 = o_ref.shape
    x = x_ref[...].astype(w_ref.dtype)            # in-kernel cast (saves an HBM pass)
    shift = shift_ref[...]
    for kh in range(kk):                          # static unroll, k is tiny (2)
        y = jnp.dot(x, w_ref[kh], preferred_element_type=jnp.float32)
        y = y + shift                             # fused BatchNorm shift
        if approx_sigmoid:
            sig = pl.reciprocal(1.0 + jnp.exp(-y), approx=True)   # exp + rcp on EUP
        else:
            sig = 1.0 / (1.0 + jnp.exp(-y))                       # exact parity path
        # rows (r, w), cols (kw, c2) -> slot kh of the interleaved output block.
        o_ref[:, kh, :, :] = (y * sig).reshape(rh, W, kc2).astype(o_ref.dtype)


def _choose_rows_per_block(NH, W, tm_hint):
    """rh = image rows per grid step; tm = rh * W input pixels per step."""
    align = 8 // math.gcd(W, 8)                   # guarantees (rh * W) % 8 == 0
    rh_cap = max(align, (max(tm_hint, W) // W) // align * align)

    def pick(cap):
        for cand in range(min(cap, NH), align - 1, -1):
            if cand % align == 0 and NH % cand == 0:
                return cand
        return None

    rh = pick(rh_cap)
    if rh is None:                                # no aligned divisor: pad NH later
        rh = min(rh_cap, ((NH + align - 1) // align) * align)
    # Megacore (v7x has 2 TCs): prefer >= 2 grid steps when the problem allows it.
    if pl.cdiv(NH, rh) < 2 and rh > align:
        smaller = pick(max(align, rh // 2))
        if smaller is not None:
            rh = smaller
    return rh, align


def conv_transpose_bn_silu_nhwc(x_nhwc, w, gamma, beta, running_mean, running_var,
                                *, eps=1e-5, k=2, s=2, p=0, tm=1024,
                                compute_dtype=jnp.bfloat16, out_dtype=None):
    """x_nhwc: (N, H, W, C1); w: (C1, C2, kh, kw) (PyTorch ConvTranspose2d layout).

    Returns (N, H*k, W*k, C2) NHWC.  Keeping activations NHWC end-to-end avoids the
    NCHW<->NHWC transposes around the kernel.
    """
    assert k == s and p == 0, "specialised to the module default k==s, p==0"
    # TODO(synk): overlapping / padded ConvTranspose2d configs (k != s or p != 0).
    N, H, W, C1 = x_nhwc.shape
    C2 = w.shape[1]
    out_dtype = x_nhwc.dtype if out_dtype is None else out_dtype

    NH = N * H
    kc2 = k * C2                                  # one kh slab's columns: (kw, c2)
    ncols = k * kc2

    x_isz = np.dtype(x_nhwc.dtype).itemsize
    w_isz = np.dtype(compute_dtype).itemsize
    o_isz = np.dtype(out_dtype).itemsize

    rh, align = _choose_rows_per_block(NH, W, tm)

    def step_bytes(rh_):
        tm_ = rh_ * W
        return (2 * tm_ * C1 * x_isz              # double-buffered X tiles
                + 2 * k * C1 * kc2 * w_isz        # weight block
                + 2 * kc2 * 4                     # shift
                + 2 * tm_ * k * kc2 * o_isz       # double-buffered output blocks
                + 2 * tm_ * kc2 * 4)              # f32 matmul intermediate / epilogue

    while rh > align and step_bytes(rh) > 40 * 1024 * 1024:   # huge-channel safety
        rh = max(align, (rh // 2) // align * align)

    NH_pad = pl.cdiv(NH, rh) * rh
    tm_rows = rh * W
    M, M_pad = NH * W, NH_pad * W

    # --- operand prep (weights / BN params only; activations stay untouched) ----
    scale = gamma / jnp.sqrt(running_var + eps)   # (C2,)
    shift = beta - running_mean * scale           # (C2,)

    X = x_nhwc.reshape(M, C1)                     # free reshape, native dtype
    if M_pad != M:
        X = jnp.pad(X, ((0, M_pad - M), (0, 0)))

    # (C1, C2, kh, kw) -> (kh, C1, kw, C2) -> (k, C1, k*C2); fold BN scale into W.
    Wm = jnp.transpose(w, (2, 0, 3, 1)).reshape(k, C1, kc2)
    Wm = (Wm * jnp.tile(scale, k)[None, None, :]).astype(compute_dtype)
    shift_cols = jnp.tile(shift, k)[None, :].astype(jnp.float32)

    grid = (NH_pad // rh,)

    vmem_limit = int(min(48 * 1024 * 1024,        # leave headroom on v7x (64 MiB)
                         max(int(1.5 * step_bytes(rh)), 16 * 1024 * 1024)))

    cost = pl.CostEstimate(
        flops=2 * M_pad * C1 * ncols,
        transcendentals=2 * M_pad * ncols,        # exp + reciprocal per element
        bytes_accessed=(M_pad * C1 * x_isz + k * C1 * kc2 * w_isz + kc2 * 4
                        + M_pad * ncols * o_isz),
    )

    kernel = partial(
        _convT_bn_silu_kernel,
        approx_sigmoid=(np.dtype(compute_dtype) != np.dtype(jnp.float32)))

    out = pl.pallas_call(
        kernel,
        out_shape=jax.ShapeDtypeStruct((NH_pad, k, W, kc2), out_dtype),
        grid_spec=pltpu.PrefetchScalarGridSpec(
            num_scalar_prefetch=0,
            grid=grid,
            in_specs=[
                pl.BlockSpec((tm_rows, C1), lambda i: (i, 0)),
                pl.BlockSpec((k, C1, kc2), lambda i: (0, 0, 0)),
                pl.BlockSpec((1, kc2), lambda i: (0, 0)),
            ],
            out_specs=pl.BlockSpec((rh, k, W, kc2), lambda i: (i, 0, 0, 0)),
        ),
        compiler_params=pltpu.CompilerParams(
            dimension_semantics=("parallel",),
            vmem_limit_bytes=vmem_limit,
        ),
        cost_estimate=cost,
    )(X, Wm, shift_cols)

    if NH_pad != NH:
        out = out[:NH]
    # (NH, kh, W, kw*C2) row-major == (N, H*k, W*k, C2) row-major -> free reshape.
    return out.reshape(N, H * k, W * k, C2)


def conv_transpose_bn_silu(x, w, gamma, beta, running_mean, running_var,
                           *, eps=1e-5, k=2, s=2, p=0, tm=1024,
                           compute_dtype=jnp.bfloat16, out_dtype=None):
    """NCHW API matching the PyTorch module; x: (N, C1, H, W) -> (N, C2, H*k, W*k).

    Prefer conv_transpose_bn_silu_nhwc in an NHWC pipeline: it skips the two layout
    transposes (pure HBM traffic) around the kernel.
    """
    x_nhwc = jnp.transpose(x, (0, 2, 3, 1))
    y = conv_transpose_bn_silu_nhwc(x_nhwc, w, gamma, beta, running_mean,
                                    running_var, eps=eps, k=k, s=s, p=p, tm=tm,
                                    compute_dtype=compute_dtype,
                                    out_dtype=out_dtype)
    return jnp.transpose(y, (0, 3, 1, 2))


def _reference(x, w, gamma, beta, mean, var, eps, k):
    # Pure-JAX f32 reference of ConvTranspose2d(k=s, p=0) + BN(eval) + SiLU.
    N, C1, H, W = x.shape
    C2 = w.shape[1]
    y = jnp.einsum("nchw,cokl->nohwkl", x, w)           # (N, C2, H, W, kh, kw)
    y = jnp.transpose(y, (0, 1, 2, 4, 3, 5)).reshape(N, C2, H * k, W * k)
    scale = gamma / jnp.sqrt(var + eps)
    shift = beta - mean * scale
    y = y * scale[None, :, None, None] + shift[None, :, None, None]
    return y * jax.nn.sigmoid(y)


if __name__ == "__main__":
    key = jax.random.PRNGKey(0)
    kx, kw_, kg, kb, km, kv = jax.random.split(key, 6)

    N, C1, C2, H, W = 2, 4, 8, 16, 16
    k = s = 2

    x = jax.random.normal(kx, (N, C1, H, W), dtype=jnp.float32)
    w = jax.random.normal(kw_, (C1, C2, k, k), dtype=jnp.float32) * 0.1
    gamma = 1.0 + 0.1 * jax.random.normal(kg, (C2,), dtype=jnp.float32)
    beta = 0.1 * jax.random.normal(kb, (C2,), dtype=jnp.float32)
    running_mean = 0.1 * jax.random.normal(km, (C2,), dtype=jnp.float32)
    running_var = jax.random.uniform(kv, (C2,), dtype=jnp.float32,
                                     minval=0.5, maxval=1.5)

    ref = _reference(x, w, gamma, beta, running_mean, running_var, 1e-5, k)

    # Default bf16 MXU path (f32 accumulate, f32 epilogue, EUP sigmoid).
    out = conv_transpose_bn_silu(x, w, gamma, beta, running_mean, running_var,
                                 k=k, s=s)
    out = jax.block_until_ready(out)
    assert out.shape == (N, C2, H * k, W * k), out.shape
    assert jnp.allclose(out, ref, atol=5e-2, rtol=5e-2), (
        float(jnp.max(jnp.abs(out - ref))))

    # Strict-parity f32 path (exact sigmoid, no approx reciprocal).
    out32 = conv_transpose_bn_silu(x, w, gamma, beta, running_mean, running_var,
                                   k=k, s=s, compute_dtype=jnp.float32)
    out32 = jax.block_until_ready(out32)
    assert jnp.allclose(out32, ref, atol=1e-4, rtol=1e-4), (
        float(jnp.max(jnp.abs(out32 - ref))))

    print("KERNEL_OK")
</pallas_src>

<mosaic_0001>
module attributes {stable_mosaic.version = 11 : i64} {
  func.func @_convT_bn_silu_kernel(%arg0: i32, %arg1: memref<256x4xf32, #tpu.memory_space<vmem>>, %arg2: memref<2x4x16xbf16, #tpu.memory_space<vmem>>, %arg3: memref<1x16xf32, #tpu.memory_space<vmem>>, %arg4: memref<16x2x16x16xf32, #tpu.memory_space<vmem>>) attributes {dimension_semantics = [#tpu.dimension_semantics<parallel>], iteration_bounds = array<i64: 2>, scalar_prefetch = 0 : i64, scratch_operands = 0 : i64, tpu.core_type = #tpu.core_type<tc>, window_params = [{transform_indices = @transform_0, window_bounds = array<i64: 256, 4>}, {pipeline_mode = #tpu.pipeline_mode<synchronous>, transform_indices = @transform_1, window_bounds = array<i64: 2, 4, 16>}, {pipeline_mode = #tpu.pipeline_mode<synchronous>, transform_indices = @transform_2, window_bounds = array<i64: 1, 16>}, {transform_indices = @transform_3, window_bounds = array<i64: 16, 2, 16, 16>}]} {
    %c0 = arith.constant 0 : index
    %c0_0 = arith.constant 0 : index
    %0 = vector.load %arg1[%c0, %c0_0] : memref<256x4xf32, #tpu.memory_space<vmem>>, vector<256x4xf32>
    %1 = arith.truncf %0 : vector<256x4xf32> to vector<256x4xbf16>
    %c0_1 = arith.constant 0 : index
    %c0_2 = arith.constant 0 : index
    %2 = vector.load %arg3[%c0_1, %c0_2] : memref<1x16xf32, #tpu.memory_space<vmem>>, vector<1x16xf32>
    %c0_3 = arith.constant 0 : index
    %c0_4 = arith.constant 0 : index
    %c0_5 = arith.constant 0 : index
    %3 = vector.load %arg2[%c0_3, %c0_4, %c0_5] : memref<2x4x16xbf16, #tpu.memory_space<vmem>>, vector<1x4x16xbf16>
    %4 = vector.shape_cast %3 : vector<1x4x16xbf16> to vector<4x16xbf16>
    %cst = arith.constant dense<0.000000e+00> : vector<256x16xf32>
    %5 = tpu.matmul %1, %4, %cst {dimension_numbers = #tpu.dot_dimension_numbers<[1], [0], [0], [1], [0, 0, 1, 1], [], []>} : vector<256x4xbf16>, vector<4x16xbf16>, vector<256x16xf32> -> vector<256x16xf32>
    %6 = vector.broadcast %2 : vector<1x16xf32> to vector<256x16xf32>
    %7 = arith.addf %5, %6 : vector<256x16xf32>
    %cst_6 = arith.constant 0.000000e+00 : f32
    %8 = vector.broadcast %cst_6 : f32 to vector<256x16xf32>
    %9 = arith.subf %8, %7 : vector<256x16xf32>
    %10 = math.exp %9 : vector<256x16xf32>
    %cst_7 = arith.constant 1.000000e+00 : f32
    %11 = vector.broadcast %cst_7 : f32 to vector<256x16xf32>
    %12 = arith.addf %11, %10 : vector<256x16xf32>
    %13 = tpu.reciprocal %12 {approx = true} : vector<256x16xf32> -> vector<256x16xf32>
    %14 = arith.mulf %7, %13 : vector<256x16xf32>
    %15 = vector.shape_cast %14 : vector<256x16xf32> to vector<16x16x16xf32>
    %c0_8 = arith.constant 0 : index
    %c0_9 = arith.constant 0 : index
    %c0_10 = arith.constant 0 : index
    %c0_11 = arith.constant 0 : index
    %16 = vector.load %arg4[%c0_8, %c0_9, %c0_10, %c0_11] : memref<16x2x16x16xf32, #tpu.memory_space<vmem>>, vector<16x1x16x16xf32>
    %17 = vector.shape_cast %16 : vector<16x1x16x16xf32> to vector<16x16x16xf32>
    %18 = vector.shape_cast %15 : vector<16x16x16xf32> to vector<16x1x16x16xf32>
    tpu.vector_store %arg4[%c0_8, %c0_9, %c0_10, %c0_11], %18 {strides = array<i32>} : memref<16x2x16x16xf32, #tpu.memory_space<vmem>>, vector<16x1x16x16xf32>,
    %c1 = arith.constant 1 : index
    %c0_12 = arith.constant 0 : index
    %c0_13 = arith.constant 0 : index
    %19 = vector.load %arg2[%c1, %c0_12, %c0_13] : memref<2x4x16xbf16, #tpu.memory_space<vmem>>, vector<1x4x16xbf16>
    %20 = vector.shape_cast %19 : vector<1x4x16xbf16> to vector<4x16xbf16>
    %cst_14 = arith.constant dense<0.000000e+00> : vector<256x16xf32>
    %21 = tpu.matmul %1, %20, %cst_14 {dimension_numbers = #tpu.dot_dimension_numbers<[1], [0], [0], [1], [0, 0, 1, 1], [], []>} : vector<256x4xbf16>, vector<4x16xbf16>, vector<256x16xf32> -> vector<256x16xf32>
    %22 = vector.broadcast %2 : vector<1x16xf32> to vector<256x16xf32>
    %23 = arith.addf %21, %22 : vector<256x16xf32>
    %cst_15 = arith.constant 0.000000e+00 : f32
    %24 = vector.broadcast %cst_15 : f32 to vector<256x16xf32>
    %25 = arith.subf %24, %23 : vector<256x16xf32>
    %26 = math.exp %25 : vector<256x16xf32>
    %cst_16 = arith.constant 1.000000e+00 : f32
    %27 = vector.broadcast %cst_16 : f32 to vector<256x16xf32>
    %28 = arith.addf %27, %26 : vector<256x16xf32>
    %29 = tpu.reciprocal %28 {approx = true} : vector<256x16xf32> -> vector<256x16xf32>
    %30 = arith.mulf %23, %29 : vector<256x16xf32>
    %31 = vector.shape_cast %30 : vector<256x16xf32> to vector<16x16x16xf32>
    %c0_17 = arith.constant 0 : index
    %c1_18 = arith.constant 1 : index
    %c0_19 = arith.constant 0 : index
    %c0_20 = arith.constant 0 : index
    %32 = vector.load %arg4[%c0_17, %c1_18, %c0_19, %c0_20] : memref<16x2x16x16xf32, #tpu.memory_space<vmem>>, vector<16x1x16x16xf32>
    %33 = vector.shape_cast %32 : vector<16x1x16x16xf32> to vector<16x16x16xf32>
    %34 = vector.shape_cast %31 : vector<16x16x16xf32> to vector<16x1x16x16xf32>
    tpu.vector_store %arg4[%c0_17, %c1_18, %c0_19, %c0_20], %34 {strides = array<i32>} : memref<16x2x16x16xf32, #tpu.memory_space<vmem>>, vector<16x1x16x16xf32>,
    return
  }
  func.func @transform_0(%arg0: i32) -> (i32, i32) {
    %c0_i32 = arith.constant 0 : i32
    %c0_i32_0 = arith.constant 0 : i32
    return %arg0, %c0_i32 : i32, i32
  }
  func.func @transform_1(%arg0: i32) -> (i32, i32, i32) {
    %c0_i32 = arith.constant 0 : i32
    %c0_i32_0 = arith.constant 0 : i32
    %c0_i32_1 = arith.constant 0 : i32
    %c0_i32_2 = arith.constant 0 : i32
    return %c0_i32, %c0_i32_0, %c0_i32_1 : i32, i32, i32
  }
  func.func @transform_2(%arg0: i32) -> (i32, i32) {
    %c0_i32 = arith.constant 0 : i32
    %c0_i32_0 = arith.constant 0 : i32
    %c0_i32_1 = arith.constant 0 : i32
    return %c0_i32, %c0_i32_0 : i32, i32
  }
  func.func @transform_3(%arg0: i32) -> (i32, i32, i32, i32) {
    %c0_i32 = arith.constant 0 : i32
    %c0_i32_0 = arith.constant 0 : i32
    %c0_i32_1 = arith.constant 0 : i32
    %c0_i32_2 = arith.constant 0 : i32
    return %arg0, %c0_i32, %c0_i32_0, %c0_i32_1 : i32, i32, i32, i32
  }
}

</mosaic_0001>

<llo_original>
// kernel: tpu_custom_call.1
$region0: #{tpu_custom_call.1}
  #allocation0 [shape = 'u32[]', space=smem, size = 0x4, offset = 0x4, fixed_abs, tag = 'smem constant byte address 0x4 - core index']
  #allocation1 [shape = 'u32[144,128]{1,0:T(1,128)}', space=vmem, size = 0x12000, scoped, tag = 'internal scratch']
  %s0 = inlined_call_operand.vmem [shape: f32[512,4], index: 0, kind: input, shape index: {}]
  %s1 = inlined_call_operand.vmem [shape: bf16[2,4,16], index: 1, kind: input, shape index: {}]
  %s2 = inlined_call_operand.vmem [shape: f32[1,16], index: 2, kind: input, shape index: {}]
  %s3 = inlined_call_operand.vmem [shape: f32[32,2,16,16], index: 3, kind: output, shape index: {}]
  %s4 = sld [smem:[#allocation0]]
  $region45: #{tpu_custom_call.1} parent=0
    _
  %s6 = ssub.s32 1, %s4
  %s7 = scalar_select 0, %s6, %s4
  loop: start=0, step=1, limit=4
  $region2: #{tpu_custom_call.1} parent=0 // loop_pre_header
    _
  $region3: #{tpu_custom_call.1} parent=0 // loop_header
    %s9 = sphi 0, %s13
    %p10 = scmp.ge.s32.totalorder %s9, 4
    %s19 = sphi 0, %s21
    %s22 = sphi 0, %s19
    %s23 = sphi 0, %s22
    %s39 = sphi 0, %s23
    %s43 = sphi 0, %s43
    %s45 = sphi 0, %s43
    %s46 = sphi 0, %s45
    %s60 = sphi 0, %s46
    %s64 = sphi 0, %s64
    %s66 = sphi 0, %s64
    %s67 = sphi 0, %s66
    %s81 = sphi 0, %s67
    %s87 = sphi 0, %s89
    %s90 = sphi 0, %s87
    %s91 = sphi 0, %s90
    %s107 = sphi 0, %s91
  $region4: #{tpu_custom_call.1} parent=0 // loop_header_branch
    %12 = sbr.rel (%p10) target = $region8
  $region5: #{tpu_custom_call.1} parent=0 // loop_body
    %s14 = ssub.s32 %s9, 1
    %s15 = ssub.s32 %s9, 2
    %s16 = sadd.s32 %s9, 1
    %s17 = ssub.s32 %s9, %s16
    %p18 = scmp.eq.s32.totalorder %s17, 0
    %s20 = sadd.s32 %s19, 1
    %s21 = scalar_select %p18, %s19, %s20
    %p24 = pneg %p18
    %p25 = scmp.eq.s32.totalorder %s9, 1
    %p26 = por %p24, %p25
    %p27 = scmp.ne.s32.totalorder %s19, %s22
    %p28 = scmp.eq.s32.totalorder %s9, 0
    %p29 = por %p27, %p28
    %p30 = scmp.ne.s32.totalorder %s19, %s22
    %p31 = scmp.eq.s32.totalorder %s14, 1
    %p32 = por %p30, %p31
    %p33 = scmp.ne.s32.totalorder %s22, %s23
    %p34 = scmp.eq.s32.totalorder %s14, 0
    %p35 = por %p33, %p34
    %p36 = scmp.ne.s32.totalorder %s22, %s23
    %p37 = scmp.eq.s32.totalorder %s15, 1
    %p38 = por %p36, %p37
    %p40 = scmp.ne.s32.totalorder %s23, %s39
    %p41 = scmp.eq.s32.totalorder %s15, 0
    %p42 = por %p40, %p41
    %s44 = sadd.s32 %s43, 1
    %p47 = scmp.eq.s32.totalorder %s9, 1
    %p48 = scmp.ne.s32.totalorder %s43, %s45
    %p49 = scmp.eq.s32.totalorder %s9, 0
    %p50 = por %p48, %p49
    %p51 = scmp.ne.s32.totalorder %s43, %s45
    %p52 = scmp.eq.s32.totalorder %s14, 1
    %p53 = por %p51, %p52
    %p54 = scmp.ne.s32.totalorder %s45, %s46
    %p55 = scmp.eq.s32.totalorder %s14, 0
    %p56 = por %p54, %p55
    %p57 = scmp.ne.s32.totalorder %s45, %s46
    %p58 = scmp.eq.s32.totalorder %s15, 1
    %p59 = por %p57, %p58
    %p61 = scmp.ne.s32.totalorder %s46, %s60
    %p62 = scmp.eq.s32.totalorder %s15, 0
    %p63 = por %p61, %p62
    %s65 = sadd.s32 %s64, 1
    %p68 = scmp.eq.s32.totalorder %s9, 1
    %p69 = scmp.ne.s32.totalorder %s64, %s66
    %p70 = scmp.eq.s32.totalorder %s9, 0
    %p71 = por %p69, %p70
    %p72 = scmp.ne.s32.totalorder %s64, %s66
    %p73 = scmp.eq.s32.totalorder %s14, 1
    %p74 = por %p72, %p73
    %p75 = scmp.ne.s32.totalorder %s66, %s67
    %p76 = scmp.eq.s32.totalorder %s14, 0
    %p77 = por %p75, %p76
    %p78 = scmp.ne.s32.totalorder %s66, %s67
    %p79 = scmp.eq.s32.totalorder %s15, 1
    %p80 = por %p78, %p79
    %p82 = scmp.ne.s32.totalorder %s67, %s81
    %p83 = scmp.eq.s32.totalorder %s15, 0
    %p84 = por %p82, %p83
    %s85 = ssub.s32 %s9, %s16
    %p86 = scmp.eq.s32.totalorder %s85, 0
    %s88 = sadd.s32 %s87, 1
    %s89 = scalar_select %p86, %s87, %s88
    %p92 = pneg %p86
    %p93 = scmp.eq.s32.totalorder %s9, 1
    %p94 = por %p92, %p93
    %p95 = scmp.ne.s32.totalorder %s87, %s90
    %p96 = scmp.eq.s32.totalorder %s9, 0
    %p97 = por %p95, %p96
    %p98 = scmp.ne.s32.totalorder %s87, %s90
    %p99 = scmp.eq.s32.totalorder %s14, 1
    %p100 = por %p98, %p99
    %p101 = scmp.ne.s32.totalorder %s90, %s91
    %p102 = scmp.eq.s32.totalorder %s14, 0
    %p103 = por %p101, %p102
    %p104 = scmp.ne.s32.totalorder %s90, %s91
    %p105 = scmp.eq.s32.totalorder %s15, 1
    %p106 = por %p104, %p105
    %p108 = scmp.ne.s32.totalorder %s91, %s107
    %p109 = scmp.eq.s32.totalorder %s15, 0
    %p110 = por %p108, %p109
    %p111 = scmp.le.s32.totalorder 1, %s9
    %p112 = scmp.lt.s32.totalorder %s9, 3
    %p113 = pnand %p111, %p112
    %p114 = pneg %p113
    // Predicated region
    $region9: #{tpu_custom_call.1} parent=5 // pred_check
      _
    $region10: #{tpu_custom_call.1} parent=5 // pred_check_branch
      %116 = sbr.rel (%p113) target = $region12
    $region11: #{tpu_custom_call.1} parent=5 // pred_region
      %s117 = ssub.s32 %s9, 1
      // Predicated region
      $region13: #{tpu_custom_call.1} parent=11 // pred_check
        %p118 = pneg %p56
      $region14: #{tpu_custom_call.1} parent=11 // pred_check_branch
        %120 = sbr.rel (%p118) target = $region16
      $region15: #{tpu_custom_call.1} parent=11 // pred_region
        _
      $region16: #{tpu_custom_call.1} parent=11 // pred_fallthru
        _
      // Predicated region
      $region17: #{tpu_custom_call.1} parent=11 // pred_check
        %p121 = pneg %p77
      $region18: #{tpu_custom_call.1} parent=11 // pred_check_branch
        %123 = sbr.rel (%p121) target = $region20
      $region19: #{tpu_custom_call.1} parent=11 // pred_region
        _
      $region20: #{tpu_custom_call.1} parent=11 // pred_fallthru
        _
    $region12: #{tpu_custom_call.1} parent=5 // pred_fallthru
      _
    %p124 = scmp.lt.s32.totalorder %s9, 2
    // Predicated region
    $region21: #{tpu_custom_call.1} parent=5 // pred_check
      %p125 = pneg %p124
    $region22: #{tpu_custom_call.1} parent=5 // pred_check_branch
      %127 = sbr.rel (%p125) target = $region24
    $region23: #{tpu_custom_call.1} parent=5 // pred_region
      // Predicated region
      $region25: #{tpu_custom_call.1} parent=23 // pred_check
        %p128 = pneg %p29
      $region26: #{tpu_custom_call.1} parent=23 // pred_check_branch
        %130 = sbr.rel (%p128) target = $region28
      $region27: #{tpu_custom_call.1} parent=23 // pred_region
        %s131 = smul.u32 32, %s9
        %p132 = scmp.lt.s32.totalorder %s131, 63
        %s133 = scalar_select %p132, %s131, 63
        %s134 = smul.addr %s133, 8
        %s135 = scalar_lea.vmem %s0, %s134
        %s136 = smul.u32 32, %s9
      $region28: #{tpu_custom_call.1} parent=23 // pred_fallthru
        _
    $region24: #{tpu_custom_call.1} parent=5 // pred_fallthru
      _
    %p137 = scmp.le.s32.totalorder 1, %s9
    %p138 = scmp.lt.s32.totalorder %s9, 3
    %p139 = pnand %p137, %p138
    %p140 = pneg %p139
    // Predicated region
    $region29: #{tpu_custom_call.1} parent=5 // pred_check
      _
    $region30: #{tpu_custom_call.1} parent=5 // pred_check_branch
      %142 = sbr.rel (%p139) target = $region32
    $region31: #{tpu_custom_call.1} parent=5 // pred_region
      %s143 = ssub.s32 %s9, 1
      %s144 = smul.u32 32, %s14
      %p145 = scmp.lt.s32.totalorder %s144, 63
      %s146 = scalar_select %p145, %s144, 63
      %s147 = smul.addr %s146, 8
      %s148 = scalar_lea.vmem %s0, %s147
      %p149 = pneg %p35
      %p150 = pneg %p32
      %p151 = pneg %p56
      %p152 = pneg %p53
      %p153 = pneg %p77
      %p154 = pneg %p74
      %p155 = pneg %p103
      %p156 = pneg %p100
      %s157 = smul.u32 16, %s14
      %p158 = scmp.lt.s32.totalorder %s157, 31
      %s159 = scalar_select %p158, %s157, 31
      %s160 = smul.addr %s159, 4
      %s161 = smul.addr %s160, 8
      %s162 = scalar_lea.vmem %s3, %s161
      %s163 = smul.u32 32, %s14
      %p164 = scmp.lt.s32.totalorder %s163, 63
      %s165 = scalar_select %p164, %s163, 63
      %s166 = smul.addr %s165, 8
      %s167 = scalar_lea.vmem %s0, %s166
      %s168 = smul.u32 32, %s14
      %s169 = smul.u32 16, %s14
      %p170 = scmp.lt.s32.totalorder %s169, 31
      %s171 = scalar_select %p170, %s169, 31
      %s172 = smul.addr %s171, 4
      %s173 = smul.addr %s172, 8
      %s174 = scalar_lea.vmem %s3, %s173
      %s175 = smul.u32 16, %s14
      %v177 = vld [vmem:[%s167] sm:$0xff]
      %v178 = vld [vmem:[%s167 + $0x8] sm:$0xff]
      %v179 = vld [vmem:[%s167 + $0x10] sm:$0xff]
      %v180 = vld [vmem:[%s167 + $0x18] sm:$0xff]
      %v181 = vld [vmem:[%s167 + $0x20] sm:$0xff]
      %v182 = vld [vmem:[%s167 + $0x28] sm:$0xff]
      %v183 = vld [vmem:[%s167 + $0x30] sm:$0xff]
      %v184 = vld [vmem:[%s167 + $0x38] sm:$0xff]
      %v185 = vld [vmem:[%s167 + $0x40] sm:$0xff]
      %v186 = vld [vmem:[%s167 + $0x48] sm:$0xff]
      %v187 = vld [vmem:[%s167 + $0x50] sm:$0xff]
      %v188 = vld [vmem:[%s167 + $0x58] sm:$0xff]
      %v189 = vld [vmem:[%s167 + $0x60] sm:$0xff]
      %v190 = vld [vmem:[%s167 + $0x68] sm:$0xff]
      %v191 = vld [vmem:[%s167 + $0x70] sm:$0xff]
      %v192 = vld [vmem:[%s167 + $0x78] sm:$0xff]
      %v193 = vld [vmem:[%s167 + $0x80] sm:$0xff]
      %v194 = vld [vmem:[%s167 + $0x88] sm:$0xff]
      %v195 = vld [vmem:[%s167 + $0x90] sm:$0xff]
      %v196 = vld [vmem:[%s167 + $0x98] sm:$0xff]
      %v197 = vld [vmem:[%s167 + $0xa0] sm:$0xff]
      %v198 = vld [vmem:[%s167 + $0xa8] sm:$0xff]
      %v199 = vld [vmem:[%s167 + $0xb0] sm:$0xff]
      %v200 = vld [vmem:[%s167 + $0xb8] sm:$0xff]
      %v201 = vld [vmem:[%s167 + $0xc0] sm:$0xff]
      %v202 = vld [vmem:[%s167 + $0xc8] sm:$0xff]
      %v203 = vld [vmem:[%s167 + $0xd0] sm:$0xff]
      %v204 = vld [vmem:[%s167 + $0xd8] sm:$0xff]
      %v205 = vld [vmem:[%s167 + $0xe0] sm:$0xff]
      %v206 = vld [vmem:[%s167 + $0xe8] sm:$0xff]
      %v207 = vld [vmem:[%s167 + $0xf0] sm:$0xff]
      %v208 = vld [vmem:[%s167 + $0xf8] sm:$0xff]
      %v209 = vpack.c.bf16 %v178, %v177
      %v210 = vpack.c.bf16 %v180, %v179
      %v211 = vpack.c.bf16 %v182, %v181
      %v212 = vpack.c.bf16 %v184, %v183
      %v213 = vpack.c.bf16 %v186, %v185
      %v214 = vpack.c.bf16 %v188, %v187
      %v215 = vpack.c.bf16 %v190, %v189
      %v216 = vpack.c.bf16 %v192, %v191
      %v217 = vpack.c.bf16 %v194, %v193
      %v218 = vpack.c.bf16 %v196, %v195
      %v219 = vpack.c.bf16 %v198, %v197
      %v220 = vpack.c.bf16 %v200, %v199
      %v221 = vpack.c.bf16 %v202, %v201
      %v222 = vpack.c.bf16 %v204, %v203
      %v223 = vpack.c.bf16 %v206, %v205
      %v224 = vpack.c.bf16 %v208, %v207
      %v225 = vld [vmem:[%s2] sm:$0x1]
      %v226 = vld [vmem:[%s1] sm:$0x3]
      %v228 = vlaneseq
      %v229 = vshrl.u32 %v228, 7
      %v230 = vsub.s32 0, %v229
      %v231 = vrot.slane %v225, %v230
      %vm233 = vcmask 31744
      %v235 = vsel %vm233, %v209, 0
      %v238 = vsel %vm233, %v210, 0
      %v241 = vsel %vm233, %v211, 0
      %v244 = vsel %vm233, %v212, 0
      %v247 = vsel %vm233, %v213, 0
      %v250 = vsel %vm233, %v214, 0
      %v253 = vsel %vm233, %v215, 0
      %v256 = vsel %vm233, %v216, 0
      %v259 = vsel %vm233, %v217, 0
      %v262 = vsel %vm233, %v218, 0
      %v265 = vsel %vm233, %v219, 0
      %v268 = vsel %vm233, %v220, 0
      %v271 = vsel %vm233, %v221, 0
      %v274 = vsel %vm233, %v222, 0
      %v277 = vsel %vm233, %v223, 0
      %v280 = vsel %vm233, %v224, 0
      %vm282 = vcmask 1041408
      %v284 = vsel %vm282, %v226, 0
      %286 = vmatprep.subr.bf16.mxu0 0
      %287 = vmatpush1.bf16.msra.mxu0 %v284
      %288 = vmatprep.subr.bf16.mxu0 0
      %289 = vmatpush1.bf16.msra.mxu0 0
      %290 = vmatprep.subr.bf16.mxu0 0
      %291 = vmatpush1.bf16.msra.mxu0 0
      %292 = vmatprep.subr.bf16.mxu0 0
      %293 = vmatpush1.bf16.msra.mxu0 0
      %294 = vmatprep.subr.bf16.mxu0 0
      %295 = vmatpush1.bf16.msra.mxu0 0
      %296 = vmatprep.subr.bf16.mxu0 0
      %297 = vmatpush1.bf16.msra.mxu0 0
      %298 = vmatprep.subr.bf16.mxu0 0
      %299 = vmatpush1.bf16.msra.mxu0 0
      %300 = vmatprep.subr.bf16.mxu0 0
      %301 = vmatpush1.bf16.msra.mxu0 0
      %302 = vmatprep.subr.bf16.mxu0 0
      %303 = vmatpush1.bf16.msra.mxu0 0
      %304 = vmatprep.subr.bf16.mxu0 0
      %305 = vmatpush1.bf16.msra.mxu0 0
      %306 = vmatprep.subr.bf16.mxu0 0
      %307 = vmatpush1.bf16.msra.mxu0 0
      %308 = vmatprep.subr.bf16.mxu0 0
      %309 = vmatpush1.bf16.msra.mxu0 0
      %310 = vmatprep.subr.bf16.mxu0 0
      %311 = vmatpush1.bf16.msra.mxu0 0
      %312 = vmatprep.subr.bf16.mxu0 0
      %313 = vmatpush1.bf16.msra.mxu0 0
      %314 = vmatprep.subr.bf16.mxu0 0
      %315 = vmatpush1.bf16.msra.mxu0 0
      %316 = vmatprep.subr.bf16.mxu0 0
      %317 = vmatpush1.bf16.msra.mxu0 0
      %318 = vmatprep.mubr.bf16.mxu0 0
      %319 = vmatmul.mubr.bf16.gmra.mrb[0].mxu0 %v235
      %v320 = vpop.f32.mrb[0].mxu0
      %v321 = vadd.f32 %v231, %v320
      %v322 = vpop.f32.mrb[0].mxu0
      %v323 = vpop.f32.mrb[0].mxu0
      %v324 = vadd.f32 %v231, %v323
      %v325 = vpop.f32.mrb[0].mxu0
      %326 = vmatprep.mubr.bf16.mxu0 0
      %327 = vmatmul.mubr.bf16.gmra.mrb[0].mxu0 %v238
      %v328 = vpop.f32.mrb[0].mxu0
      %v329 = vadd.f32 %v231, %v328
      %v330 = vpop.f32.mrb[0].mxu0
      %v331 = vpop.f32.mrb[0].mxu0
      %v332 = vadd.f32 %v231, %v331
      %v333 = vpop.f32.mrb[0].mxu0
      %334 = vmatprep.mubr.bf16.mxu0 0
      %335 = vmatmul.mubr.bf16.gmra.mrb[0].mxu0 %v241
      %v336 = vpop.f32.mrb[0].mxu0
      %v337 = vadd.f32 %v231, %v336
      %v338 = vpop.f32.mrb[0].mxu0
      %v339 = vpop.f32.mrb[0].mxu0
      %v340 = vadd.f32 %v231, %v339
      %v341 = vpop.f32.mrb[0].mxu0
      %342 = vmatprep.mubr.bf16.mxu0 0
      %343 = vmatmul.mubr.bf16.gmra.mrb[0].mxu0 %v244
      %v344 = vpop.f32.mrb[0].mxu0
      %v345 = vadd.f32 %v231, %v344
      %v346 = vpop.f32.mrb[0].mxu0
      %v347 = vpop.f32.mrb[0].mxu0
      %v348 = vadd.f32 %v231, %v347
      %v349 = vpop.f32.mrb[0].mxu0
      %350 = vmatprep.mubr.bf16.mxu0 0
      %351 = vmatmul.mubr.bf16.gmra.mrb[0].mxu0 %v247
      %v352 = vpop.f32.mrb[0].mxu0
      %v353 = vadd.f32 %v231, %v352
      %v354 = vpop.f32.mrb[0].mxu0
      %v355 = vpop.f32.mrb[0].mxu0
      %v356 = vadd.f32 %v231, %v355
      %v357 = vpop.f32.mrb[0].mxu0
      %358 = vmatprep.mubr.bf16.mxu0 0
      %359 = vmatmul.mubr.bf16.gmra.mrb[0].mxu0 %v250
      %v360 = vpop.f32.mrb[0].mxu0
      %v361 = vadd.f32 %v231, %v360
      %v362 = vpop.f32.mrb[0].mxu0
      %v363 = vpop.f32.mrb[0].mxu0
      %v364 = vadd.f32 %v231, %v363
      %v365 = vpop.f32.mrb[0].mxu0
      %366 = vmatprep.mubr.bf16.mxu0 0
      %367 = vmatmul.mubr.bf16.gmra.mrb[0].mxu0 %v253
      %v368 = vpop.f32.mrb[0].mxu0
      %v369 = vadd.f32 %v231, %v368
      %v370 = vpop.f32.mrb[0].mxu0
      %v371 = vpop.f32.mrb[0].mxu0
      %v372 = vadd.f32 %v231, %v371
      %v373 = vpop.f32.mrb[0].mxu0
      %374 = vmatprep.mubr.bf16.mxu0 0
      %375 = vmatmul.mubr.bf16.gmra.mrb[0].mxu0 %v256
      %v376 = vpop.f32.mrb[0].mxu0
      %v377 = vadd.f32 %v231, %v376
      %v378 = vpop.f32.mrb[0].mxu0
      %v379 = vpop.f32.mrb[0].mxu0
      %v380 = vadd.f32 %v231, %v379
      %v381 = vpop.f32.mrb[0].mxu0
      %382 = vmatprep.mubr.bf16.mxu0 0
      %383 = vmatmul.mubr.bf16.gmra.mrb[0].mxu0 %v259
      %v384 = vpop.f32.mrb[0].mxu0
      %v385 = vadd.f32 %v231, %v384
      %v386 = vpop.f32.mrb[0].mxu0
      %v387 = vpop.f32.mrb[0].mxu0
      %v388 = vadd.f32 %v231, %v387
      %v389 = vpop.f32.mrb[0].mxu0
      %390 = vmatprep.mubr.bf16.mxu0 0
      %391 = vmatmul.mubr.bf16.gmra.mrb[0].mxu0 %v262
      %v392 = vpop.f32.mrb[0].mxu0
      %v393 = vadd.f32 %v231, %v392
      %v394 = vpop.f32.mrb[0].mxu0
      %v395 = vpop.f32.mrb[0].mxu0
      %v396 = vadd.f32 %v231, %v395
      %v397 = vpop.f32.mrb[0].mxu0
      %398 = vmatprep.mubr.bf16.mxu0 0
      %399 = vmatmul.mubr.bf16.gmra.mrb[0].mxu0 %v265
      %v400 = vpop.f32.mrb[0].mxu0
      %v401 = vadd.f32 %v231, %v400
      %v402 = vpop.f32.mrb[0].mxu0
      %v403 = vpop.f32.mrb[0].mxu0
      %v404 = vadd.f32 %v231, %v403
      %v405 = vpop.f32.mrb[0].mxu0
      %406 = vmatprep.mubr.bf16.mxu0 0
      %407 = vmatmul.mubr.bf16.gmra.mrb[0].mxu0 %v268
      %v408 = vpop.f32.mrb[0].mxu0
      %v409 = vadd.f32 %v231, %v408
      %v410 = vpop.f32.mrb[0].mxu0
      %v411 = vpop.f32.mrb[0].mxu0
      %v412 = vadd.f32 %v231, %v411
      %v413 = vpop.f32.mrb[0].mxu0
      %414 = vmatprep.mubr.bf16.mxu0 0
      %415 = vmatmul.mubr.bf16.gmra.mrb[0].mxu0 %v271
      %v416 = vpop.f32.mrb[0].mxu0
      %v417 = vadd.f32 %v231, %v416
      %v418 = vpop.f32.mrb[0].mxu0
      %v419 = vpop.f32.mrb[0].mxu0
      %v420 = vadd.f32 %v231, %v419
      %v421 = vpop.f32.mrb[0].mxu0
      %422 = vmatprep.mubr.bf16.mxu0 0
      %423 = vmatmul.mubr.bf16.gmra.mrb[0].mxu0 %v274
      %v424 = vpop.f32.mrb[0].mxu0
      %v425 = vadd.f32 %v231, %v424
      %v426 = vpop.f32.mrb[0].mxu0
      %v427 = vpop.f32.mrb[0].mxu0
      %v428 = vadd.f32 %v231, %v427
      %v429 = vpop.f32.mrb[0].mxu0
      %430 = vmatprep.mubr.bf16.mxu0 0
      %431 = vmatmul.mubr.bf16.gmra.mrb[0].mxu0 %v277
      %v432 = vpop.f32.mrb[0].mxu0
      %v433 = vadd.f32 %v231, %v432
      %v434 = vpop.f32.mrb[0].mxu0
      %v435 = vpop.f32.mrb[0].mxu0
      %v436 = vadd.f32 %v231, %v435
      %v437 = vpop.f32.mrb[0].mxu0
      %438 = vmatprep.mubr.bf16.mxu0 0
      %439 = vmatmul.mubr.bf16.gmra.mrb[0].mxu0 %v280
      %v440 = vpop.f32.mrb[0].mxu0
      %v441 = vadd.f32 %v231, %v440
      %v442 = vpop.f32.mrb[0].mxu0
      %v443 = vpop.f32.mrb[0].mxu0
      %v444 = vadd.f32 %v231, %v443
      %v445 = vpop.f32.mrb[0].mxu0
      %446 = vdwg.mxu0
      %v447 = vsub.f32 0.0, %v321
      %v448 = vsub.f32 0.0, %v324
      %v449 = vsub.f32 0.0, %v329
      %v450 = vsub.f32 0.0, %v332
      %v451 = vsub.f32 0.0, %v337
      %v452 = vsub.f32 0.0, %v340
      %v453 = vsub.f32 0.0, %v345
      %v454 = vsub.f32 0.0, %v348
      %v455 = vsub.f32 0.0, %v353
      %v456 = vsub.f32 0.0, %v356
      %v457 = vsub.f32 0.0, %v361
      %v458 = vsub.f32 0.0, %v364
      %v459 = vsub.f32 0.0, %v369
      %v460 = vsub.f32 0.0, %v372
      %v461 = vsub.f32 0.0, %v377
      %v462 = vsub.f32 0.0, %v380
      %v463 = vsub.f32 0.0, %v385
      %v464 = vsub.f32 0.0, %v388
      %v465 = vsub.f32 0.0, %v393
      %v466 = vsub.f32 0.0, %v396
      %v467 = vsub.f32 0.0, %v401
      %v468 = vsub.f32 0.0, %v404
      %v469 = vsub.f32 0.0, %v409
      %v470 = vsub.f32 0.0, %v412
      %v471 = vsub.f32 0.0, %v417
      %v472 = vsub.f32 0.0, %v420
      %v473 = vsub.f32 0.0, %v425
      %v474 = vsub.f32 0.0, %v428
      %v475 = vsub.f32 0.0, %v433
      %v476 = vsub.f32 0.0, %v436
      %v477 = vsub.f32 0.0, %v441
      %v478 = vsub.f32 0.0, %v444
      %v479 = vmul.f32 %v447, 1.442695
      %v480 = vpow.pop %v479
      %v481 = vmul.f32 %v448, 1.442695
      %v482 = vpow.pop %v481
      %v483 = vmul.f32 %v449, 1.442695
      %v484 = vpow.pop %v483
      %v485 = vmul.f32 %v450, 1.442695
      %v486 = vpow.pop %v485
      %v487 = vmul.f32 %v451, 1.442695
      %v488 = vpow.pop %v487
      %v489 = vmul.f32 %v452, 1.442695
      %v490 = vpow.pop %v489
      %v491 = vmul.f32 %v453, 1.442695
      %v492 = vpow.pop %v491
      %v493 = vmul.f32 %v454, 1.442695
      %v494 = vpow.pop %v493
      %v495 = vmul.f32 %v455, 1.442695
      %v496 = vpow.pop %v495
      %v497 = vmul.f32 %v456, 1.442695
      %v498 = vpow.pop %v497
      %v499 = vmul.f32 %v457, 1.442695
      %v500 = vpow.pop %v499
      %v501 = vmul.f32 %v458, 1.442695
      %v502 = vpow.pop %v501
      %v503 = vmul.f32 %v459, 1.442695
      %v504 = vpow.pop %v503
      %v505 = vmul.f32 %v460, 1.442695
      %v506 = vpow.pop %v505
      %v507 = vmul.f32 %v461, 1.442695
      %v508 = vpow.pop %v507
      %v509 = vmul.f32 %v462, 1.442695
      %v510 = vpow.pop %v509
      %v511 = vmul.f32 %v463, 1.442695
      %v512 = vpow.pop %v511
      %v513 = vmul.f32 %v464, 1.442695
      %v514 = vpow.pop %v513
      %v515 = vmul.f32 %v465, 1.442695
      %v516 = vpow.pop %v515
      %v517 = vmul.f32 %v466, 1.442695
      %v518 = vpow.pop %v517
      %v519 = vmul.f32 %v467, 1.442695
      %v520 = vpow.pop %v519
      %v521 = vmul.f32 %v468, 1.442695
      %v522 = vpow.pop %v521
      %v523 = vmul.f32 %v469, 1.442695
      %v524 = vpow.pop %v523
      %v525 = vmul.f32 %v470, 1.442695
      %v526 = vpow.pop %v525
      %v527 = vmul.f32 %v471, 1.442695
      %v528 = vpow.pop %v527
      %v529 = vmul.f32 %v472, 1.442695
      %v530 = vpow.pop %v529
      %v531 = vmul.f32 %v473, 1.442695
      %v532 = vpow.pop %v531
      %v533 = vmul.f32 %v474, 1.442695
      %v534 = vpow.pop %v533
      %v535 = vmul.f32 %v475, 1.442695
      %v536 = vpow.pop %v535
      %v537 = vmul.f32 %v476, 1.442695
      %v538 = vpow.pop %v537
      %v539 = vmul.f32 %v477, 1.442695
      %v540 = vpow.pop %v539
      %v541 = vmul.f32 %v478, 1.442695
      %v542 = vpow.pop %v541
      %v543 = vadd.f32 %v480, 1.0
      %v544 = vadd.f32 %v482, 1.0
      %v545 = vadd.f32 %v484, 1.0
      %v546 = vadd.f32 %v486, 1.0
      %v547 = vadd.f32 %v488, 1.0
      %v548 = vadd.f32 %v490, 1.0
      %v549 = vadd.f32 %v492, 1.0
      %v550 = vadd.f32 %v494, 1.0
      %v551 = vadd.f32 %v496, 1.0
      %v552 = vadd.f32 %v498, 1.0
      %v553 = vadd.f32 %v500, 1.0
      %v554 = vadd.f32 %v502, 1.0
      %v555 = vadd.f32 %v504, 1.0
      %v556 = vadd.f32 %v506, 1.0
      %v557 = vadd.f32 %v508, 1.0
      %v558 = vadd.f32 %v510, 1.0
      %v559 = vadd.f32 %v512, 1.0
      %v560 = vadd.f32 %v514, 1.0
      %v561 = vadd.f32 %v516, 1.0
      %v562 = vadd.f32 %v518, 1.0
      %v563 = vadd.f32 %v520, 1.0
      %v564 = vadd.f32 %v522, 1.0
      %v565 = vadd.f32 %v524, 1.0
      %v566 = vadd.f32 %v526, 1.0
      %v567 = vadd.f32 %v528, 1.0
      %v568 = vadd.f32 %v530, 1.0
      %v569 = vadd.f32 %v532, 1.0
      %v570 = vadd.f32 %v534, 1.0
      %v571 = vadd.f32 %v536, 1.0
      %v572 = vadd.f32 %v538, 1.0
      %v573 = vadd.f32 %v540, 1.0
      %v574 = vadd.f32 %v542, 1.0
      %v575 = vrcp.pop %v543
      %v576 = vrcp.pop %v544
      %v577 = vrcp.pop %v545
      %v578 = vrcp.pop %v546
      %v579 = vrcp.pop %v547
      %v580 = vrcp.pop %v548
      %v581 = vrcp.pop %v549
      %v582 = vrcp.pop %v550
      %v583 = vrcp.pop %v551
      %v584 = vrcp.pop %v552
      %v585 = vrcp.pop %v553
      %v586 = vrcp.pop %v554
      %v587 = vrcp.pop %v555
      %v588 = vrcp.pop %v556
      %v589 = vrcp.pop %v557
      %v590 = vrcp.pop %v558
      %v591 = vrcp.pop %v559
      %v592 = vrcp.pop %v560
      %v593 = vrcp.pop %v561
      %v594 = vrcp.pop %v562
      %v595 = vrcp.pop %v563
      %v596 = vrcp.pop %v564
      %v597 = vrcp.pop %v565
      %v598 = vrcp.pop %v566
      %v599 = vrcp.pop %v567
      %v600 = vrcp.pop %v568
      %v601 = vrcp.pop %v569
      %v602 = vrcp.pop %v570
      %v603 = vrcp.pop %v571
      %v604 = vrcp.pop %v572
      %v605 = vrcp.pop %v573
      %v606 = vrcp.pop %v574
      %v607 = vmul.f32 %v321, %v575
      %v608 = vmul.f32 %v324, %v576
      %v609 = vmul.f32 %v329, %v577
      %v610 = vmul.f32 %v332, %v578
      %v611 = vmul.f32 %v337, %v579
      %v612 = vmul.f32 %v340, %v580
      %v613 = vmul.f32 %v345, %v581
      %v614 = vmul.f32 %v348, %v582
      %v615 = vmul.f32 %v353, %v583
      %v616 = vmul.f32 %v356, %v584
      %v617 = vmul.f32 %v361, %v585
      %v618 = vmul.f32 %v364, %v586
      %v619 = vmul.f32 %v369, %v587
      %v620 = vmul.f32 %v372, %v588
      %v621 = vmul.f32 %v377, %v589
      %v622 = vmul.f32 %v380, %v590
      %v623 = vmul.f32 %v385, %v591
      %v624 = vmul.f32 %v388, %v592
      %v625 = vmul.f32 %v393, %v593
      %v626 = vmul.f32 %v396, %v594
      %v627 = vmul.f32 %v401, %v595
      %v628 = vmul.f32 %v404, %v596
      %v629 = vmul.f32 %v409, %v597
      %v630 = vmul.f32 %v412, %v598
      %v631 = vmul.f32 %v417, %v599
      %v632 = vmul.f32 %v420, %v600
      %v633 = vmul.f32 %v425, %v601
      %v634 = vmul.f32 %v428, %v602
      %v635 = vmul.f32 %v433, %v603
      %v636 = vmul.f32 %v436, %v604
      %v637 = vmul.f32 %v441, %v605
      %v638 = vmul.f32 %v444, %v606
      %vm639 = vcmask 130048
      %640 = vst.msk [vmem:[%s174] sm:$0xff] %vm639, %v607
      %641 = vst.msk [vmem:[%s174 + $0x8] sm:$0xff] %vm639, %v608
      %642 = vst.msk [vmem:[%s174 + $0x20] sm:$0xff] %vm639, %v609
      %643 = vst.msk [vmem:[%s174 + $0x28] sm:$0xff] %vm639, %v610
      %644 = vst.msk [vmem:[%s174 + $0x40] sm:$0xff] %vm639, %v611
      %645 = vst.msk [vmem:[%s174 + $0x48] sm:$0xff] %vm639, %v612
      %646 = vst.msk [vmem:[%s174 + $0x60] sm:$0xff] %vm639, %v613
      %647 = vst.msk [vmem:[%s174 + $0x68] sm:$0xff] %vm639, %v614
      %648 = vst.msk [vmem:[%s174 + $0x80] sm:$0xff] %vm639, %v615
      %649 = vst.msk [vmem:[%s174 + $0x88] sm:$0xff] %vm639, %v616
      %650 = vst.msk [vmem:[%s174 + $0xa0] sm:$0xff] %vm639, %v617
      %651 = vst.msk [vmem:[%s174 + $0xa8] sm:$0xff] %vm639, %v618
      %652 = vst.msk [vmem:[%s174 + $0xc0] sm:$0xff] %vm639, %v619
      %653 = vst.msk [vmem:[%s174 + $0xc8] sm:$0xff] %vm639, %v620
      %654 = vst.msk [vmem:[%s174 + $0xe0] sm:$0xff] %vm639, %v621
      %655 = vst.msk [vmem:[%s174 + $0xe8] sm:$0xff] %vm639, %v622
      %656 = vst.msk [vmem:[%s174 + $0x100] sm:$0xff] %vm639, %v623
      %657 = vst.msk [vmem:[%s174 + $0x108] sm:$0xff] %vm639, %v624
      %658 = vst.msk [vmem:[%s174 + $0x120] sm:$0xff] %vm639, %v625
      %659 = vst.msk [vmem:[%s174 + $0x128] sm:$0xff] %vm639, %v626
      %660 = vst.msk [vmem:[%s174 + $0x140] sm:$0xff] %vm639, %v627
      %661 = vst.msk [vmem:[%s174 + $0x148] sm:$0xff] %vm639, %v628
      %662 = vst.msk [vmem:[%s174 + $0x160] sm:$0xff] %vm639, %v629
      %663 = vst.msk [vmem:[%s174 + $0x168] sm:$0xff] %vm639, %v630
      %664 = vst.msk [vmem:[%s174 + $0x180] sm:$0xff] %vm639, %v631
      %665 = vst.msk [vmem:[%s174 + $0x188] sm:$0xff] %vm639, %v632
      %666 = vst.msk [vmem:[%s174 + $0x1a0] sm:$0xff] %vm639, %v633
      %667 = vst.msk [vmem:[%s174 + $0x1a8] sm:$0xff] %vm639, %v634
      %668 = vst.msk [vmem:[%s174 + $0x1c0] sm:$0xff] %vm639, %v635
      %669 = vst.msk [vmem:[%s174 + $0x1c8] sm:$0xff] %vm639, %v636
      %670 = vst.msk [vmem:[%s174 + $0x1e0] sm:$0xff] %vm639, %v637
      %671 = vst.msk [vmem:[%s174 + $0x1e8] sm:$0xff] %vm639, %v638
      %s672 = scalar_lea.vmem %s1, 2
      %v673 = vld [vmem:[%s672] sm:$0x3]
      %v675 = vsel %vm282, %v673, 0
      %677 = vmatprep.subr.bf16.mxu0 0
      %678 = vmatpush1.bf16.msra.mxu0 %v675
      %679 = vmatprep.subr.bf16.mxu0 0
      %680 = vmatpush1.bf16.msra.mxu0 0
      %681 = vmatprep.subr.bf16.mxu0 0
      %682 = vmatpush1.bf16.msra.mxu0 0
      %683 = vmatprep.subr.bf16.mxu0 0
      %684 = vmatpush1.bf16.msra.mxu0 0
      %685 = vmatprep.subr.bf16.mxu0 0
      %686 = vmatpush1.bf16.msra.mxu0 0
      %687 = vmatprep.subr.bf16.mxu0 0
      %688 = vmatpush1.bf16.msra.mxu0 0
      %689 = vmatprep.subr.bf16.mxu0 0
      %690 = vmatpush1.bf16.msra.mxu0 0
      %691 = vmatprep.subr.bf16.mxu0 0
      %692 = vmatpush1.bf16.msra.mxu0 0
      %693 = vmatprep.subr.bf16.mxu0 0
      %694 = vmatpush1.bf16.msra.mxu0 0
      %695 = vmatprep.subr.bf16.mxu0 0
      %696 = vmatpush1.bf16.msra.mxu0 0
      %697 = vmatprep.subr.bf16.mxu0 0
      %698 = vmatpush1.bf16.msra.mxu0 0
      %699 = vmatprep.subr.bf16.mxu0 0
      %700 = vmatpush1.bf16.msra.mxu0 0
      %701 = vmatprep.subr.bf16.mxu0 0
      %702 = vmatpush1.bf16.msra.mxu0 0
      %703 = vmatprep.subr.bf16.mxu0 0
      %704 = vmatpush1.bf16.msra.mxu0 0
      %705 = vmatprep.subr.bf16.mxu0 0
      %706 = vmatpush1.bf16.msra.mxu0 0
      %707 = vmatprep.subr.bf16.mxu0 0
      %708 = vmatpush1.bf16.msra.mxu0 0
      %709 = vmatprep.mubr.bf16.mxu0 0
      %710 = vmatmul.mubr.bf16.gmra.mrb[0].mxu0 %v235
      %v711 = vpop.f32.mrb[0].mxu0
      %v712 = vadd.f32 %v231, %v711
      %v713 = vpop.f32.mrb[0].mxu0
      %v714 = vpop.f32.mrb[0].mxu0
      %v715 = vadd.f32 %v231, %v714
      %v716 = vpop.f32.mrb[0].mxu0
      %717 = vmatprep.mubr.bf16.mxu0 0
      %718 = vmatmul.mubr.bf16.gmra.mrb[0].mxu0 %v238
      %v719 = vpop.f32.mrb[0].mxu0
      %v720 = vadd.f32 %v231, %v719
      %v721 = vpop.f32.mrb[0].mxu0
      %v722 = vpop.f32.mrb[0].mxu0
      %v723 = vadd.f32 %v231, %v722
      %v724 = vpop.f32.mrb[0].mxu0
      %725 = vmatprep.mubr.bf16.mxu0 0
      %726 = vmatmul.mubr.bf16.gmra.mrb[0].mxu0 %v241
      %v727 = vpop.f32.mrb[0].mxu0
      %v728 = vadd.f32 %v231, %v727
      %v729 = vpop.f32.mrb[0].mxu0
      %v730 = vpop.f32.mrb[0].mxu0
      %v731 = vadd.f32 %v231, %v730
      %v732 = vpop.f32.mrb[0].mxu0
      %733 = vmatprep.mubr.bf16.mxu0 0
      %734 = vmatmul.mubr.bf16.gmra.mrb[0].mxu0 %v244
      %v735 = vpop.f32.mrb[0].mxu0
      %v736 = vadd.f32 %v231, %v735
      %v737 = vpop.f32.mrb[0].mxu0
      %v738 = vpop.f32.mrb[0].mxu0
      %v739 = vadd.f32 %v231, %v738
      %v740 = vpop.f32.mrb[0].mxu0
      %741 = vmatprep.mubr.bf16.mxu0 0
      %742 = vmatmul.mubr.bf16.gmra.mrb[0].mxu0 %v247
      %v743 = vpop.f32.mrb[0].mxu0
      %v744 = vadd.f32 %v231, %v743
      %v745 = vpop.f32.mrb[0].mxu0
      %v746 = vpop.f32.mrb[0].mxu0
      %v747 = vadd.f32 %v231, %v746
      %v748 = vpop.f32.mrb[0].mxu0
      %749 = vmatprep.mubr.bf16.mxu0 0
      %750 = vmatmul.mubr.bf16.gmra.mrb[0].mxu0 %v250
      %v751 = vpop.f32.mrb[0].mxu0
      %v752 = vadd.f32 %v231, %v751
      %v753 = vpop.f32.mrb[0].mxu0
      %v754 = vpop.f32.mrb[0].mxu0
      %v755 = vadd.f32 %v231, %v754
      %v756 = vpop.f32.mrb[0].mxu0
      %757 = vmatprep.mubr.bf16.mxu0 0
      %758 = vmatmul.mubr.bf16.gmra.mrb[0].mxu0 %v253
      %v759 = vpop.f32.mrb[0].mxu0
      %v760 = vadd.f32 %v231, %v759
      %v761 = vpop.f32.mrb[0].mxu0
      %v762 = vpop.f32.mrb[0].mxu0
      %v763 = vadd.f32 %v231, %v762
      %v764 = vpop.f32.mrb[0].mxu0
      %765 = vmatprep.mubr.bf16.mxu0 0
      %766 = vmatmul.mubr.bf16.gmra.mrb[0].mxu0 %v256
      %v767 = vpop.f32.mrb[0].mxu0
      %v768 = vadd.f32 %v231, %v767
      %v769 = vpop.f32.mrb[0].mxu0
      %v770 = vpop.f32.mrb[0].mxu0
      %v771 = vadd.f32 %v231, %v770
      %v772 = vpop.f32.mrb[0].mxu0
      %773 = vmatprep.mubr.bf16.mxu0 0
      %774 = vmatmul.mubr.bf16.gmra.mrb[0].mxu0 %v259
      %v775 = vpop.f32.mrb[0].mxu0
      %v776 = vadd.f32 %v231, %v775
      %v777 = vpop.f32.mrb[0].mxu0
      %v778 = vpop.f32.mrb[0].mxu0
      %v779 = vadd.f32 %v231, %v778
      %v780 = vpop.f32.mrb[0].mxu0
      %781 = vmatprep.mubr.bf16.mxu0 0
      %782 = vmatmul.mubr.bf16.gmra.mrb[0].mxu0 %v262
      %v783 = vpop.f32.mrb[0].mxu0
      %v784 = vadd.f32 %v231, %v783
      %v785 = vpop.f32.mrb[0].mxu0
      %v786 = vpop.f32.mrb[0].mxu0
      %v787 = vadd.f32 %v231, %v786
      %v788 = vpop.f32.mrb[0].mxu0
      %789 = vmatprep.mubr.bf16.mxu0 0
      %790 = vmatmul.mubr.bf16.gmra.mrb[0].mxu0 %v265
      %v791 = vpop.f32.mrb[0].mxu0
      %v792 = vadd.f32 %v231, %v791
      %v793 = vpop.f32.mrb[0].mxu0
      %v794 = vpop.f32.mrb[0].mxu0
      %v795 = vadd.f32 %v231, %v794
      %v796 = vpop.f32.mrb[0].mxu0
      %797 = vmatprep.mubr.bf16.mxu0 0
      %798 = vmatmul.mubr.bf16.gmra.mrb[0].mxu0 %v268
      %v799 = vpop.f32.mrb[0].mxu0
      %v800 = vadd.f32 %v231, %v799
      %v801 = vpop.f32.mrb[0].mxu0
      %v802 = vpop.f32.mrb[0].mxu0
      %v803 = vadd.f32 %v231, %v802
      %v804 = vpop.f32.mrb[0].mxu0
      %805 = vmatprep.mubr.bf16.mxu0 0
      %806 = vmatmul.mubr.bf16.gmra.mrb[0].mxu0 %v271
      %v807 = vpop.f32.mrb[0].mxu0
      %v808 = vadd.f32 %v231, %v807
      %v809 = vpop.f32.mrb[0].mxu0
      %v810 = vpop.f32.mrb[0].mxu0
      %v811 = vadd.f32 %v231, %v810
      %v812 = vpop.f32.mrb[0].mxu0
      %813 = vmatprep.mubr.bf16.mxu0 0
      %814 = vmatmul.mubr.bf16.gmra.mrb[0].mxu0 %v274
      %v815 = vpop.f32.mrb[0].mxu0
      %v816 = vadd.f32 %v231, %v815
      %v817 = vpop.f32.mrb[0].mxu0
      %v818 = vpop.f32.mrb[0].mxu0
      %v819 = vadd.f32 %v231, %v818
      %v820 = vpop.f32.mrb[0].mxu0
      %821 = vmatprep.mubr.bf16.mxu0 0
      %822 = vmatmul.mubr.bf16.gmra.mrb[0].mxu0 %v277
      %v823 = vpop.f32.mrb[0].mxu0
      %v824 = vadd.f32 %v231, %v823
      %v825 = vpop.f32.mrb[0].mxu0
      %v826 = vpop.f32.mrb[0].mxu0
      %v827 = vadd.f32 %v231, %v826
      %v828 = vpop.f32.mrb[0].mxu0
      %829 = vmatprep.mubr.bf16.mxu0 0
      %830 = vmatmul.mubr.bf16.gmra.mrb[0].mxu0 %v280
      %v831 = vpop.f32.mrb[0].mxu0
      %v832 = vadd.f32 %v231, %v831
      %v833 = vpop.f32.mrb[0].mxu0
      %v834 = vpop.f32.mrb[0].mxu0
      %v835 = vadd.f32 %v231, %v834
      %v836 = vpop.f32.mrb[0].mxu0
      %837 = vdwg.mxu0
      %v838 = vsub.f32 0.0, %v712
      %v839 = vsub.f32 0.0, %v715
      %v840 = vsub.f32 0.0, %v720
      %v841 = vsub.f32 0.0, %v723
      %v842 = vsub.f32 0.0, %v728
      %v843 = vsub.f32 0.0, %v731
      %v844 = vsub.f32 0.0, %v736
      %v845 = vsub.f32 0.0, %v739
      %v846 = vsub.f32 0.0, %v744
      %v847 = vsub.f32 0.0, %v747
      %v848 = vsub.f32 0.0, %v752
      %v849 = vsub.f32 0.0, %v755
      %v850 = vsub.f32 0.0, %v760
      %v851 = vsub.f32 0.0, %v763
      %v852 = vsub.f32 0.0, %v768
      %v853 = vsub.f32 0.0, %v771
      %v854 = vsub.f32 0.0, %v776
      %v855 = vsub.f32 0.0, %v779
      %v856 = vsub.f32 0.0, %v784
      %v857 = vsub.f32 0.0, %v787
      %v858 = vsub.f32 0.0, %v792
      %v859 = vsub.f32 0.0, %v795
      %v860 = vsub.f32 0.0, %v800
      %v861 = vsub.f32 0.0, %v803
      %v862 = vsub.f32 0.0, %v808
      %v863 = vsub.f32 0.0, %v811
      %v864 = vsub.f32 0.0, %v816
      %v865 = vsub.f32 0.0, %v819
      %v866 = vsub.f32 0.0, %v824
      %v867 = vsub.f32 0.0, %v827
      %v868 = vsub.f32 0.0, %v832
      %v869 = vsub.f32 0.0, %v835
      %v870 = vmul.f32 %v838, 1.442695
      %v871 = vpow.pop %v870
      %v872 = vmul.f32 %v839, 1.442695
      %v873 = vpow.pop %v872
      %v874 = vmul.f32 %v840, 1.442695
      %v875 = vpow.pop %v874
      %v876 = vmul.f32 %v841, 1.442695
      %v877 = vpow.pop %v876
      %v878 = vmul.f32 %v842, 1.442695
      %v879 = vpow.pop %v878
      %v880 = vmul.f32 %v843, 1.442695
      %v881 = vpow.pop %v880
      %v882 = vmul.f32 %v844, 1.442695
      %v883 = vpow.pop %v882
      %v884 = vmul.f32 %v845, 1.442695
      %v885 = vpow.pop %v884
      %v886 = vmul.f32 %v846, 1.442695
      %v887 = vpow.pop %v886
      %v888 = vmul.f32 %v847, 1.442695
      %v889 = vpow.pop %v888
      %v890 = vmul.f32 %v848, 1.442695
      %v891 = vpow.pop %v890
      %v892 = vmul.f32 %v849, 1.442695
      %v893 = vpow.pop %v892
      %v894 = vmul.f32 %v850, 1.442695
      %v895 = vpow.pop %v894
      %v896 = vmul.f32 %v851, 1.442695
      %v897 = vpow.pop %v896
      %v898 = vmul.f32 %v852, 1.442695
      %v899 = vpow.pop %v898
      %v900 = vmul.f32 %v853, 1.442695
      %v901 = vpow.pop %v900
      %v902 = vmul.f32 %v854, 1.442695
      %v903 = vpow.pop %v902
      %v904 = vmul.f32 %v855, 1.442695
      %v905 = vpow.pop %v904
      %v906 = vmul.f32 %v856, 1.442695
      %v907 = vpow.pop %v906
      %v908 = vmul.f32 %v857, 1.442695
      %v909 = vpow.pop %v908
      %v910 = vmul.f32 %v858, 1.442695
      %v911 = vpow.pop %v910
      %v912 = vmul.f32 %v859, 1.442695
      %v913 = vpow.pop %v912
      %v914 = vmul.f32 %v860, 1.442695
      %v915 = vpow.pop %v914
      %v916 = vmul.f32 %v861, 1.442695
      %v917 = vpow.pop %v916
      %v918 = vmul.f32 %v862, 1.442695
      %v919 = vpow.pop %v918
      %v920 = vmul.f32 %v863, 1.442695
      %v921 = vpow.pop %v920
      %v922 = vmul.f32 %v864, 1.442695
      %v923 = vpow.pop %v922
      %v924 = vmul.f32 %v865, 1.442695
      %v925 = vpow.pop %v924
      %v926 = vmul.f32 %v866, 1.442695
      %v927 = vpow.pop %v926
      %v928 = vmul.f32 %v867, 1.442695
      %v929 = vpow.pop %v928
      %v930 = vmul.f32 %v868, 1.442695
      %v931 = vpow.pop %v930
      %v932 = vmul.f32 %v869, 1.442695
      %v933 = vpow.pop %v932
      %v934 = vadd.f32 %v871, 1.0
      %v935 = vadd.f32 %v873, 1.0
      %v936 = vadd.f32 %v875, 1.0
      %v937 = vadd.f32 %v877, 1.0
      %v938 = vadd.f32 %v879, 1.0
      %v939 = vadd.f32 %v881, 1.0
      %v940 = vadd.f32 %v883, 1.0
      %v941 = vadd.f32 %v885, 1.0
      %v942 = vadd.f32 %v887, 1.0
      %v943 = vadd.f32 %v889, 1.0
      %v944 = vadd.f32 %v891, 1.0
      %v945 = vadd.f32 %v893, 1.0
      %v946 = vadd.f32 %v895, 1.0
      %v947 = vadd.f32 %v897, 1.0
      %v948 = vadd.f32 %v899, 1.0
      %v949 = vadd.f32 %v901, 1.0
      %v950 = vadd.f32 %v903, 1.0
      %v951 = vadd.f32 %v905, 1.0
      %v952 = vadd.f32 %v907, 1.0
      %v953 = vadd.f32 %v909, 1.0
      %v954 = vadd.f32 %v911, 1.0
      %v955 = vadd.f32 %v913, 1.0
      %v956 = vadd.f32 %v915, 1.0
      %v957 = vadd.f32 %v917, 1.0
      %v958 = vadd.f32 %v919, 1.0
      %v959 = vadd.f32 %v921, 1.0
      %v960 = vadd.f32 %v923, 1.0
      %v961 = vadd.f32 %v925, 1.0
      %v962 = vadd.f32 %v927, 1.0
      %v963 = vadd.f32 %v929, 1.0
      %v964 = vadd.f32 %v931, 1.0
      %v965 = vadd.f32 %v933, 1.0
      %v966 = vrcp.pop %v934
      %v967 = vrcp.pop %v935
      %v968 = vrcp.pop %v936
      %v969 = vrcp.pop %v937
      %v970 = vrcp.pop %v938
      %v971 = vrcp.pop %v939
      %v972 = vrcp.pop %v940
      %v973 = vrcp.pop %v941
      %v974 = vrcp.pop %v942
      %v975 = vrcp.pop %v943
      %v976 = vrcp.pop %v944
      %v977 = vrcp.pop %v945
      %v978 = vrcp.pop %v946
      %v979 = vrcp.pop %v947
      %v980 = vrcp.pop %v948
      %v981 = vrcp.pop %v949
      %v982 = vrcp.pop %v950
      %v983 = vrcp.pop %v951
      %v984 = vrcp.pop %v952
      %v985 = vrcp.pop %v953
      %v986 = vrcp.pop %v954
      %v987 = vrcp.pop %v955
      %v988 = vrcp.pop %v956
      %v989 = vrcp.pop %v957
      %v990 = vrcp.pop %v958
      %v991 = vrcp.pop %v959
      %v992 = vrcp.pop %v960
      %v993 = vrcp.pop %v961
      %v994 = vrcp.pop %v962
      %v995 = vrcp.pop %v963
      %v996 = vrcp.pop %v964
      %v997 = vrcp.pop %v965
      %v998 = vmul.f32 %v712, %v966
      %v999 = vmul.f32 %v715, %v967
      %v1000 = vmul.f32 %v720, %v968
      %v1001 = vmul.f32 %v723, %v969
      %v1002 = vmul.f32 %v728, %v970
      %v1003 = vmul.f32 %v731, %v971
      %v1004 = vmul.f32 %v736, %v972
      %v1005 = vmul.f32 %v739, %v973
      %v1006 = vmul.f32 %v744, %v974
      %v1007 = vmul.f32 %v747, %v975
      %v1008 = vmul.f32 %v752, %v976
      %v1009 = vmul.f32 %v755, %v977
      %v1010 = vmul.f32 %v760, %v978
      %v1011 = vmul.f32 %v763, %v979
      %v1012 = vmul.f32 %v768, %v980
      %v1013 = vmul.f32 %v771, %v981
      %v1014 = vmul.f32 %v776, %v982
      %v1015 = vmul.f32 %v779, %v983
      %v1016 = vmul.f32 %v784, %v984
      %v1017 = vmul.f32 %v787, %v985
      %v1018 = vmul.f32 %v792, %v986
      %v1019 = vmul.f32 %v795, %v987
      %v1020 = vmul.f32 %v800, %v988
      %v1021 = vmul.f32 %v803, %v989
      %v1022 = vmul.f32 %v808, %v990
      %v1023 = vmul.f32 %v811, %v991
      %v1024 = vmul.f32 %v816, %v992
      %v1025 = vmul.f32 %v819, %v993
      %v1026 = vmul.f32 %v824, %v994
      %v1027 = vmul.f32 %v827, %v995
      %v1028 = vmul.f32 %v832, %v996
      %v1029 = vmul.f32 %v835, %v997
      %s1030 = scalar_lea.vmem %s174, 16
      %1031 = vst.msk [vmem:[%s1030] sm:$0xff] %vm639, %v998
      %1032 = vst.msk [vmem:[%s1030 + $0x8] sm:$0xff] %vm639, %v999
      %1033 = vst.msk [vmem:[%s1030 + $0x20] sm:$0xff] %vm639, %v1000
      %1034 = vst.msk [vmem:[%s1030 + $0x28] sm:$0xff] %vm639, %v1001
      %1035 = vst.msk [vmem:[%s1030 + $0x40] sm:$0xff] %vm639, %v1002
      %1036 = vst.msk [vmem:[%s1030 + $0x48] sm:$0xff] %vm639, %v1003
      %1037 = vst.msk [vmem:[%s1030 + $0x60] sm:$0xff] %vm639, %v1004
      %1038 = vst.msk [vmem:[%s1030 + $0x68] sm:$0xff] %vm639, %v1005
      %1039 = vst.msk [vmem:[%s1030 + $0x80] sm:$0xff] %vm639, %v1006
      %1040 = vst.msk [vmem:[%s1030 + $0x88] sm:$0xff] %vm639, %v1007
      %1041 = vst.msk [vmem:[%s1030 + $0xa0] sm:$0xff] %vm639, %v1008
      %1042 = vst.msk [vmem:[%s1030 + $0xa8] sm:$0xff] %vm639, %v1009
      %1043 = vst.msk [vmem:[%s1030 + $0xc0] sm:$0xff] %vm639, %v1010
      %1044 = vst.msk [vmem:[%s1030 + $0xc8] sm:$0xff] %vm639, %v1011
      %1045 = vst.msk [vmem:[%s1030 + $0xe0] sm:$0xff] %vm639, %v1012
      %1046 = vst.msk [vmem:[%s1030 + $0xe8] sm:$0xff] %vm639, %v1013
      %1047 = vst.msk [vmem:[%s1030 + $0x100] sm:$0xff] %vm639, %v1014
      %1048 = vst.msk [vmem:[%s1030 + $0x108] sm:$0xff] %vm639, %v1015
      %1049 = vst.msk [vmem:[%s1030 + $0x120] sm:$0xff] %vm639, %v1016
      %1050 = vst.msk [vmem:[%s1030 + $0x128] sm:$0xff] %vm639, %v1017
      %1051 = vst.msk [vmem:[%s1030 + $0x140] sm:$0xff] %vm639, %v1018
      %1052 = vst.msk [vmem:[%s1030 + $0x148] sm:$0xff] %vm639, %v1019
      %1053 = vst.msk [vmem:[%s1030 + $0x160] sm:$0xff] %vm639, %v1020
      %1054 = vst.msk [vmem:[%s1030 + $0x168] sm:$0xff] %vm639, %v1021
      %1055 = vst.msk [vmem:[%s1030 + $0x180] sm:$0xff] %vm639, %v1022
      %1056 = vst.msk [vmem:[%s1030 + $0x188] sm:$0xff] %vm639, %v1023
      %1057 = vst.msk [vmem:[%s1030 + $0x1a0] sm:$0xff] %vm639, %v1024
      %1058 = vst.msk [vmem:[%s1030 + $0x1a8] sm:$0xff] %vm639, %v1025
      %1059 = vst.msk [vmem:[%s1030 + $0x1c0] sm:$0xff] %vm639, %v1026
      %1060 = vst.msk [vmem:[%s1030 + $0x1c8] sm:$0xff] %vm639, %v1027
      %1061 = vst.msk [vmem:[%s1030 + $0x1e0] sm:$0xff] %vm639, %v1028
      %1062 = vst.msk [vmem:[%s1030 + $0x1e8] sm:$0xff] %vm639, %v1029
      %s1063 = smul.u32 16, %s14
      %p1064 = scmp.lt.s32.totalorder %s1063, 31
      %s1065 = scalar_select %p1064, %s1063, 31
      %s1066 = smul.addr %s1065, 4
      %s1067 = smul.addr %s1066, 8
      %s1068 = scalar_lea.vmem %s3, %s1067
      // Predicated region
      $region33: #{tpu_custom_call.1} parent=31 // pred_check
        %p1069 = pneg %p100
      $region34: #{tpu_custom_call.1} parent=31 // pred_check_branch
        %1071 = sbr.rel (%p1069) target = $region36
      $region35: #{tpu_custom_call.1} parent=31 // pred_region
        %s1072 = smul.u32 16, %s14
      $region36: #{tpu_custom_call.1} parent=31 // pred_fallthru
        _
    $region32: #{tpu_custom_call.1} parent=5 // pred_fallthru
      _
    %p1073 = scmp.le.s32.totalorder 2, %s9
    // Predicated region
    $region37: #{tpu_custom_call.1} parent=5 // pred_check
      %p1074 = pneg %p1073
    $region38: #{tpu_custom_call.1} parent=5 // pred_check_branch
      %1076 = sbr.rel (%p1074) target = $region40
    $region39: #{tpu_custom_call.1} parent=5 // pred_region
      %s1077 = ssub.s32 %s9, 2
      // Predicated region
      $region41: #{tpu_custom_call.1} parent=39 // pred_check
        %p1078 = pneg %p106
      $region42: #{tpu_custom_call.1} parent=39 // pred_check_branch
        %1080 = sbr.rel (%p1078) target = $region44
      $region43: #{tpu_custom_call.1} parent=39 // pred_region
        %s1081 = smul.u32 16, %s15
        %p1082 = scmp.lt.s32.totalorder %s1081, 31
        %s1083 = scalar_select %p1082, %s1081, 31
        %s1084 = smul.addr %s1083, 4
        %s1085 = smul.addr %s1084, 8
        %s1086 = scalar_lea.vmem %s3, %s1085
      $region44: #{tpu_custom_call.1} parent=39 // pred_fallthru
        _
    $region40: #{tpu_custom_call.1} parent=5 // pred_fallthru
      _
  $region6: #{tpu_custom_call.1} parent=0 // loop_footer
    %s13 = sadd.s32 1, %s9
  $region7: #{tpu_custom_call.1} parent=0 // loop_footer_branch
    %8 = sbr.rel target = $region3
  $region8: #{tpu_custom_call.1} parent=0 // loop_exit
    _

</llo_original>
